<compile_context>
chip_gen: v5e
topology: v5e:2x2
jax: 0.10.0
libtpu: 0.0.40
codegen_flags: <defaults>
</compile_context>

<pallas_src>
import functools

import jax
import jax.numpy as jnp
from jax.experimental import pallas as pl
from jax.experimental.pallas import tpu as pltpu

_EPS = 1e-5
_N_PHASES = 4   # 0: convt1/shortcut + bn1 stats, 1: bn2 stats, 2: bn3 stats, 3: output


def _lane_partials(v, acc_w):
    """Fold a (C, tp) tile into (C, acc_w) per-lane-chunk partial sums (VPU adds only)."""
    if acc_w == 1:
        return jnp.sum(v, axis=1, keepdims=True)
    p = v[:, 0:acc_w]
    for i in range(1, v.shape[1] // acc_w):          # static, 128-aligned lane slices
        p = p + v[:, i * acc_w:(i + 1) * acc_w]
    return p


def _affine_from_stats(s_ref, q_ref, gamma, beta, inv_p):
    """Per-channel BN scale/shift from accumulated sum / sum-of-squares partials."""
    s = jnp.sum(s_ref[...], axis=1, keepdims=True)   # one small XLU reduce per use
    q = jnp.sum(q_ref[...], axis=1, keepdims=True)
    mean = s * inv_p
    var = q * inv_p - mean * mean                    # biased variance (training-mode BN)
    a = gamma * jax.lax.rsqrt(var + _EPS)
    c = beta - a * mean
    return a, c


def _ubneck_kernel(x_ref, wstk_ref, w2_ref,
                   g1_ref, b1_ref, g2_ref, b2_ref, g3_ref, b3_ref,
                   out_ref,
                   cache, s1, q1, s2, q2, s3, q3,
                   *, inv_p, tp, cr_pad, cout, acc_w):
    ph = pl.program_id(0)   # phase (strict dependency chain)
    n = pl.program_id(1)    # batch index
    t = pl.program_id(2)    # spatial (lane) tile index

    off = t * tp
    if tp % 128 == 0:
        off = pl.multiple_of(off, 128)

    # Zero the cross-tile statistic accumulators at the very first grid step.
    @pl.when(jnp.logical_and(ph == 0, jnp.logical_and(n == 0, t == 0)))
    def _init():
        for r in (s1, q1, s2, q2, s3, q3):
            r[...] = jnp.zeros_like(r)

    # Persistent VMEM cache slab for this batch element: rows [0, cr_pad) hold t1
    # (convt1 output, zero-padded channels), rows [cr_pad, cr_pad+cout) hold the
    # shortcut conv output.  Written once in phase 0, read in phases 1-3.
    slab = cache.at[n]

    @pl.when(ph == 0)
    def _phase0():
        x = x_ref[...]                                # (Cin, tp): ONLY HBM read of x
        # Stacked [convt1 ; shortcut] weights -> single MXU matmul over the x tile.
        both = jnp.dot(wstk_ref[...], x, preferred_element_type=jnp.float32)
        slab[:, pl.ds(off, tp)] = both
        t1 = both[:cr_pad, :]
        s1[...] += _lane_partials(t1, acc_w)
        q1[...] += _lane_partials(t1 * t1, acc_w)

    @pl.when(ph >= 1)
    def _later():
        t1 = slab[pl.ds(0, cr_pad), pl.ds(off, tp)]   # VMEM cache read, no HBM traffic
        a1, c1 = _affine_from_stats(s1, q1, g1_ref[...], b1_ref[...], inv_p)
        z1 = jnp.maximum(a1 * t1 + c1, 0.0)           # bn1 + relu1

        @pl.when(ph == 1)
        def _acc_bn2():
            # bn2 runs after the nearest upsample in the module; stats are identical at
            # low resolution (every element is replicated exactly 4x).
            s2[...] += _lane_partials(z1, acc_w)
            q2[...] += _lane_partials(z1 * z1, acc_w)

        @pl.when(ph >= 2)
        def _after_bn2():
            a2, c2 = _affine_from_stats(s2, q2, g2_ref[...], b2_ref[...], inv_p)
            z2 = jnp.maximum(a2 * z1 + c2, 0.0)       # bn2 + relu2
            m = jnp.dot(w2_ref[...], z2, preferred_element_type=jnp.float32)  # convt2

            @pl.when(ph == 2)
            def _acc_bn3():
                s3[...] += _lane_partials(m, acc_w)
                q3[...] += _lane_partials(m * m, acc_w)

            @pl.when(ph == _N_PHASES - 1)
            def _final():
                a3, c3 = _affine_from_stats(s3, q3, g3_ref[...], b3_ref[...], inv_p)
                sc = slab[pl.ds(cr_pad, cout), pl.ds(off, tp)]   # cached shortcut
                out_ref[...] = jnp.maximum(a3 * m + c3 + sc, 0.0)  # bn3 + add + relu3


def _pick_lane_tile(hw, cap=2048):
    """Largest multiple of 128 dividing H*W (capped); fall back to the full extent."""
    best = None
    for cand in range(128, min(hw, cap) + 1, 128):
        if hw % cand == 0:
            best = cand
    return best if best is not None else hw


def _vmem_capacity_bytes():
    try:
        return int(pltpu.get_tpu_info().vmem_capacity_bytes)
    except Exception:
        return 64 * 1024 * 1024       # conservative default (v7x physical VMEM)


def _vmem_estimate(N, Cin, Cstk, Cr_pad, Cout, HW, tp, acc_w):
    f = 4  # float32 bytes
    cache = N * Cstk * HW * f                          # phase-resident activation cache
    io = 2 * (Cin + Cout) * tp * f                     # double-buffered x-in / out blocks
    weights = (Cstk * Cin + Cout * Cr_pad + 4 * Cr_pad + 2 * Cout) * f
    stats = (4 * Cr_pad + 2 * Cout) * acc_w * f
    temps = (Cstk + 2 * Cr_pad + 3 * Cout) * tp * f    # rough live-value footprint
    return cache + io + weights + stats + temps


def ubneck_forward(x_nchw, params, *, tp=None):
    """x_nchw: (N, Cin, H, W) float32 -> (N, Cout, 2H, 2W) float32."""
    w1, w2, wsc, g1, b1, g2, b2, g3, b3 = params
    N, Cin, H, W = x_nchw.shape
    Cr = w1.shape[0]
    Cout = w2.shape[0]
    HW = H * W
    assert Cin % 8 == 0 and Cout % 8 == 0, "channel dims must be sublane (8) aligned"

    # Pad the reduced depth to a sublane multiple so the stacked weight / cache rows are
    # 8-aligned.  Padded channels carry zero weights and zero gamma/beta, which makes
    # them exactly neutral through bn1/relu1/bn2/relu2/convt2.
    Cr_pad = ((Cr + 7) // 8) * 8
    pad = Cr_pad - Cr
    if pad:
        def zrows(a):
            return jnp.concatenate([a, jnp.zeros((pad,) + a.shape[1:], a.dtype)], axis=0)
        w1p = zrows(w1)
        g1p, b1p, g2p, b2p = zrows(g1), zrows(b1), zrows(g2), zrows(b2)
        w2p = jnp.concatenate([w2, jnp.zeros((Cout, pad), w2.dtype)], axis=1)
    else:
        w1p, g1p, b1p, g2p, b2p, w2p = w1, g1, b1, g2, b2, w2
    # convt1 and the shortcut conv share the same x operand -> one stacked MXU matmul.
    wstk = jnp.concatenate([w1p, wsc], axis=0)         # (Cr_pad + Cout, Cin)
    Cstk = Cr_pad + Cout

    vmem_cap = _vmem_capacity_bytes()

    if tp is None:
        cap = 2048
        while True:
            tp = _pick_lane_tile(HW, cap)
            acc_w = 128 if tp % 128 == 0 else 1
            if (_vmem_estimate(N, Cin, Cstk, Cr_pad, Cout, HW, tp, acc_w)
                    <= int(0.8 * vmem_cap)) or cap <= 128:
                break
            cap //= 2
    acc_w = 128 if tp % 128 == 0 else 1
    assert HW % tp == 0
    n_t = HW // tp

    est = _vmem_estimate(N, Cin, Cstk, Cr_pad, Cout, HW, tp, acc_w)
    if est > int(0.9 * vmem_cap):
        # TODO(synk): HBM-scratch fallback (write t1/sc to an HBM output in phase 0 and
        #             stream those, not x, in later phases) for very large activations.
        raise NotImplementedError(
            f"low-res activation cache ({est} B) does not fit in VMEM ({vmem_cap} B)")
    vmem_limit = int(min(0.9 * vmem_cap, max(32 << 20, 2 * est)))

    inv_p = 1.0 / float(N * HW)   # BN divisor at low resolution (exact, see header)
    x_flat = x_nchw.reshape(N * Cin, HW)   # flattened NCHW; no transpose needed

    grid = (_N_PHASES, N, n_t)

    def x_map(ph, n, t):      # only phase 0 streams x; later phases pin to block (0, 0)
        first = ph == 0
        return (jnp.where(first, n, 0), jnp.where(first, t, 0))

    def out_map(ph, n, t):    # only the final phase writes real output blocks
        last = ph == _N_PHASES - 1
        return (jnp.where(last, n, 0), jnp.where(last, t, 0))

    def const_map(ph, n, t):  # weights / BN params stay resident in VMEM
        return (0, 0)

    kernel = functools.partial(_ubneck_kernel, inv_p=inv_p, tp=tp, cr_pad=Cr_pad,
                               cout=Cout, acc_w=acc_w)

    out_low_flat = pl.pallas_call(
        kernel,
        out_shape=jax.ShapeDtypeStruct((N * Cout, HW), jnp.float32),
        grid_spec=pltpu.PrefetchScalarGridSpec(
            num_scalar_prefetch=0,
            grid=grid,
            in_specs=[
                pl.BlockSpec((Cin, tp), x_map),         # x (flattened NCHW)
                pl.BlockSpec((Cstk, Cin), const_map),   # stacked [convt1 ; shortcut] W
                pl.BlockSpec((Cout, Cr_pad), const_map),  # convt2 weight (padded cols)
                pl.BlockSpec((Cr_pad, 1), const_map),   # bn1 gamma
                pl.BlockSpec((Cr_pad, 1), const_map),   # bn1 beta
                pl.BlockSpec((Cr_pad, 1), const_map),   # bn2 gamma
                pl.BlockSpec((Cr_pad, 1), const_map),   # bn2 beta
                pl.BlockSpec((Cout, 1), const_map),     # bn3 gamma
                pl.BlockSpec((Cout, 1), const_map),     # bn3 beta
            ],
            out_specs=pl.BlockSpec((Cout, tp), out_map),
            scratch_shapes=[
                pltpu.VMEM((N, Cstk, HW), jnp.float32),     # t1 / shortcut VMEM cache
                pltpu.VMEM((Cr_pad, acc_w), jnp.float32),   # sum(t1)
                pltpu.VMEM((Cr_pad, acc_w), jnp.float32),   # sumsq(t1)
                pltpu.VMEM((Cr_pad, acc_w), jnp.float32),   # sum(relu1 out)
                pltpu.VMEM((Cr_pad, acc_w), jnp.float32),   # sumsq(relu1 out)
                pltpu.VMEM((Cout, acc_w), jnp.float32),     # sum(convt2 out)
                pltpu.VMEM((Cout, acc_w), jnp.float32),     # sumsq(convt2 out)
            ],
        ),
        compiler_params=pltpu.CompilerParams(
            # Shared stat accumulators + the phase dependency chain require strictly
            # sequential grid execution.
            dimension_semantics=("arbitrary", "arbitrary", "arbitrary"),
            vmem_limit_bytes=vmem_limit,
        ),
    )(x_flat, wstk, w2p, g1p, b1p, g2p, b2p, g3, b3)

    out_low = out_low_flat.reshape(N, Cout, H, W)
    # Nearest x2 upsample of the low-res result.  Single broadcast + reshape so XLA
    # emits one fused pass (read 1x, write 4x) with no intermediate materialization.
    out = jnp.broadcast_to(out_low[:, :, :, None, :, None],
                           (N, Cout, H, 2, W, 2)).reshape(N, Cout, 2 * H, 2 * W)
    return out


def ubneck_reference(x, params):
    """Pure-JAX NCHW reference mirroring the PyTorch forward (full-resolution path)."""
    w1, w2, wsc, g1, b1, g2, b2, g3, b3 = params

    def bn(t, g, b):
        mean = jnp.mean(t, axis=(0, 2, 3), keepdims=True)
        var = jnp.mean(t * t, axis=(0, 2, 3), keepdims=True) - mean * mean
        return (t - mean) * jax.lax.rsqrt(var + _EPS) * g.reshape(1, -1, 1, 1) \
            + b.reshape(1, -1, 1, 1)

    def up2(a):
        return jnp.repeat(jnp.repeat(a, 2, axis=2), 2, axis=3)

    t = jnp.einsum('oc,nchw->nohw', w1, x)                 # convt1 (1x1)
    t = jnp.maximum(bn(t, g1, b1), 0.0)                    # bn1 + relu1
    t = up2(t)                                             # up_main (nearest)
    t = jnp.maximum(bn(t, g2, b2), 0.0)                    # bn2 + relu2
    t = jnp.einsum('oc,nchw->nohw', w2, t)                 # convt2 (1x1)
    t = bn(t, g3, b3)                                      # bn3
    sc = jnp.einsum('oc,nchw->nohw', wsc, up2(x))          # up_sc: Upsample + Conv1x1
    return jnp.maximum(t + sc, 0.0)                        # x + x_copy ; relu3


if __name__ == "__main__":
    # Small shapes consistent with the module: projection_ratio=4 -> Cr = Cin/4.
    N, Cin, H, W = 2, 16, 16, 16
    Cout = 8
    Cr = Cin // 4

    key = jax.random.PRNGKey(0)
    ks = jax.random.split(key, 10)

    # convt1: ConvTranspose2d(Cin -> Cr, k=1)  weight (Cin, Cr, 1, 1): use W^T = (Cr, Cin)
    w1 = jax.random.normal(ks[0], (Cr, Cin), jnp.float32) / jnp.sqrt(Cin)
    # convt2: ConvTranspose2d(Cr -> Cout, k=1) weight (Cr, Cout, 1, 1): use W^T = (Cout, Cr)
    w2 = jax.random.normal(ks[1], (Cout, Cr), jnp.float32) / jnp.sqrt(Cr)
    # up_sc conv: Conv2d(Cin -> Cout, k=1)     weight (Cout, Cin, 1, 1): use (Cout, Cin)
    wsc = jax.random.normal(ks[2], (Cout, Cin), jnp.float32) / jnp.sqrt(Cin)
    # BatchNorm affine parameters, (C, 1) for the (C, lanes) kernel layout.
    g1 = 1.0 + 0.1 * jax.random.normal(ks[3], (Cr, 1), jnp.float32)
    b1 = 0.1 * jax.random.normal(ks[4], (Cr, 1), jnp.float32)
    g2 = 1.0 + 0.1 * jax.random.normal(ks[5], (Cr, 1), jnp.float32)
    b2 = 0.1 * jax.random.normal(ks[6], (Cr, 1), jnp.float32)
    g3 = 1.0 + 0.1 * jax.random.normal(ks[7], (Cout, 1), jnp.float32)
    b3 = 0.1 * jax.random.normal(ks[8], (Cout, 1), jnp.float32)
    params = (w1, w2, wsc, g1, b1, g2, b2, g3, b3)

    x = jax.random.normal(ks[9], (N, Cin, H, W), jnp.float32)

    # tp=128 forces 2 lane tiles per image (plus N=2 batches), exercising the cross-tile
    # BatchNorm statistic accumulation and the VMEM activation-cache indexing paths.
    out = jax.block_until_ready(ubneck_forward(x, params, tp=128))
    ref = jax.block_until_ready(ubneck_reference(x, params))

    assert out.shape == (N, Cout, 2 * H, 2 * W), out.shape
    err = float(jnp.max(jnp.abs(out - ref)))
    assert jnp.allclose(out, ref, rtol=2e-4, atol=2e-4), err
    print("KERNEL_OK")
</pallas_src>

<mosaic_0001>
module attributes {stable_mosaic.version = 11 : i64} {
  func.func @_ubneck_kernel(%arg0: i32, %arg1: i32, %arg2: i32, %arg3: memref<16x128xf32, #tpu.memory_space<vmem>>, %arg4: memref<16x16xf32, #tpu.memory_space<vmem>>, %arg5: memref<8x8xf32, #tpu.memory_space<vmem>>, %arg6: memref<8x1xf32, #tpu.memory_space<vmem>>, %arg7: memref<8x1xf32, #tpu.memory_space<vmem>>, %arg8: memref<8x1xf32, #tpu.memory_space<vmem>>, %arg9: memref<8x1xf32, #tpu.memory_space<vmem>>, %arg10: memref<8x1xf32, #tpu.memory_space<vmem>>, %arg11: memref<8x1xf32, #tpu.memory_space<vmem>>, %arg12: memref<8x128xf32, #tpu.memory_space<vmem>>, %arg13: memref<2x16x256xf32, #tpu.memory_space<vmem>>, %arg14: memref<8x128xf32, #tpu.memory_space<vmem>>, %arg15: memref<8x128xf32, #tpu.memory_space<vmem>>, %arg16: memref<8x128xf32, #tpu.memory_space<vmem>>, %arg17: memref<8x128xf32, #tpu.memory_space<vmem>>, %arg18: memref<8x128xf32, #tpu.memory_space<vmem>>, %arg19: memref<8x128xf32, #tpu.memory_space<vmem>>) attributes {dimension_semantics = [#tpu.dimension_semantics<arbitrary>, #tpu.dimension_semantics<arbitrary>, #tpu.dimension_semantics<arbitrary>], iteration_bounds = array<i64: 4, 2, 2>, scalar_prefetch = 0 : i64, scratch_operands = 7 : i64, tpu.core_type = #tpu.core_type<tc>, window_params = [{transform_indices = @transform_0, window_bounds = array<i64: 16, 128>}, {pipeline_mode = #tpu.pipeline_mode<synchronous>, transform_indices = @transform_1, window_bounds = array<i64: 16, 16>}, {pipeline_mode = #tpu.pipeline_mode<synchronous>, transform_indices = @transform_2, window_bounds = array<i64: 8, 8>}, {pipeline_mode = #tpu.pipeline_mode<synchronous>, transform_indices = @transform_3, window_bounds = array<i64: 8, 1>}, {pipeline_mode = #tpu.pipeline_mode<synchronous>, transform_indices = @transform_4, window_bounds = array<i64: 8, 1>}, {pipeline_mode = #tpu.pipeline_mode<synchronous>, transform_indices = @transform_5, window_bounds = array<i64: 8, 1>}, {pipeline_mode = #tpu.pipeline_mode<synchronous>, transform_indices = @transform_6, window_bounds = array<i64: 8, 1>}, {pipeline_mode = #tpu.pipeline_mode<synchronous>, transform_indices = @transform_7, window_bounds = array<i64: 8, 1>}, {pipeline_mode = #tpu.pipeline_mode<synchronous>, transform_indices = @transform_8, window_bounds = array<i64: 8, 1>}, {transform_indices = @transform_9, window_bounds = array<i64: 8, 128>}]} {
    %c128_i32 = arith.constant 128 : i32
    %0 = arith.muli %arg2, %c128_i32 : i32
    %1 = tpu.assume_multiple %0, 128 : i32
    %c0_i32 = arith.constant 0 : i32
    %2 = arith.cmpi eq, %arg0, %c0_i32 : i32
    %c0_i32_0 = arith.constant 0 : i32
    %3 = arith.cmpi eq, %arg1, %c0_i32_0 : i32
    %c0_i32_1 = arith.constant 0 : i32
    %4 = arith.cmpi eq, %arg2, %c0_i32_1 : i32
    %5 = arith.andi %3, %4 : i1
    %6 = arith.andi %2, %5 : i1
    %7 = arith.extui %6 : i1 to i32
    %c0_i32_2 = arith.constant 0 : i32
    %8 = arith.cmpi ne, %7, %c0_i32_2 : i32
    scf.if %8 {
      %cst = arith.constant 0.000000e+00 : f32
      %15 = vector.broadcast %cst : f32 to vector<8x128xf32>
      %c0 = arith.constant 0 : index
      %c0_6 = arith.constant 0 : index
      %16 = vector.load %arg14[%c0, %c0_6] : memref<8x128xf32, #tpu.memory_space<vmem>>, vector<8x128xf32>
      tpu.vector_store %arg14[%c0, %c0_6], %15 {strides = array<i32>} : memref<8x128xf32, #tpu.memory_space<vmem>>, vector<8x128xf32>,
      %cst_7 = arith.constant 0.000000e+00 : f32
      %17 = vector.broadcast %cst_7 : f32 to vector<8x128xf32>
      %c0_8 = arith.constant 0 : index
      %c0_9 = arith.constant 0 : index
      %18 = vector.load %arg15[%c0_8, %c0_9] : memref<8x128xf32, #tpu.memory_space<vmem>>, vector<8x128xf32>
      tpu.vector_store %arg15[%c0_8, %c0_9], %17 {strides = array<i32>} : memref<8x128xf32, #tpu.memory_space<vmem>>, vector<8x128xf32>,
      %cst_10 = arith.constant 0.000000e+00 : f32
      %19 = vector.broadcast %cst_10 : f32 to vector<8x128xf32>
      %c0_11 = arith.constant 0 : index
      %c0_12 = arith.constant 0 : index
      %20 = vector.load %arg16[%c0_11, %c0_12] : memref<8x128xf32, #tpu.memory_space<vmem>>, vector<8x128xf32>
      tpu.vector_store %arg16[%c0_11, %c0_12], %19 {strides = array<i32>} : memref<8x128xf32, #tpu.memory_space<vmem>>, vector<8x128xf32>,
      %cst_13 = arith.constant 0.000000e+00 : f32
      %21 = vector.broadcast %cst_13 : f32 to vector<8x128xf32>
      %c0_14 = arith.constant 0 : index
      %c0_15 = arith.constant 0 : index
      %22 = vector.load %arg17[%c0_14, %c0_15] : memref<8x128xf32, #tpu.memory_space<vmem>>, vector<8x128xf32>
      tpu.vector_store %arg17[%c0_14, %c0_15], %21 {strides = array<i32>} : memref<8x128xf32, #tpu.memory_space<vmem>>, vector<8x128xf32>,
      %cst_16 = arith.constant 0.000000e+00 : f32
      %23 = vector.broadcast %cst_16 : f32 to vector<8x128xf32>
      %c0_17 = arith.constant 0 : index
      %c0_18 = arith.constant 0 : index
      %24 = vector.load %arg18[%c0_17, %c0_18] : memref<8x128xf32, #tpu.memory_space<vmem>>, vector<8x128xf32>
      tpu.vector_store %arg18[%c0_17, %c0_18], %23 {strides = array<i32>} : memref<8x128xf32, #tpu.memory_space<vmem>>, vector<8x128xf32>,
      %cst_19 = arith.constant 0.000000e+00 : f32
      %25 = vector.broadcast %cst_19 : f32 to vector<8x128xf32>
      %c0_20 = arith.constant 0 : index
      %c0_21 = arith.constant 0 : index
      %26 = vector.load %arg19[%c0_20, %c0_21] : memref<8x128xf32, #tpu.memory_space<vmem>>, vector<8x128xf32>
      tpu.vector_store %arg19[%c0_20, %c0_21], %25 {strides = array<i32>} : memref<8x128xf32, #tpu.memory_space<vmem>>, vector<8x128xf32>,
    } else {
    }
    %c0_i32_3 = arith.constant 0 : i32
    %9 = arith.cmpi eq, %arg0, %c0_i32_3 : i32
    %10 = arith.extui %9 : i1 to i32
    %c0_i32_4 = arith.constant 0 : i32
    %11 = arith.cmpi ne, %10, %c0_i32_4 : i32
    scf.if %11 {
      %c0 = arith.constant 0 : index
      %c0_6 = arith.constant 0 : index
      %15 = vector.load %arg3[%c0, %c0_6] : memref<16x128xf32, #tpu.memory_space<vmem>>, vector<16x128xf32>
      %c0_7 = arith.constant 0 : index
      %c0_8 = arith.constant 0 : index
      %16 = vector.load %arg4[%c0_7, %c0_8] : memref<16x16xf32, #tpu.memory_space<vmem>>, vector<16x16xf32>
      %cst = arith.constant dense<0.000000e+00> : vector<16x128xf32>
      %17 = tpu.matmul %16, %15, %cst {dimension_numbers = #tpu.dot_dimension_numbers<[1], [0], [0], [1], [0, 0, 1, 1], [], []>} : vector<16x16xf32>, vector<16x128xf32>, vector<16x128xf32> -> vector<16x128xf32>
      %c0_i32_9 = arith.constant 0 : i32
      %c0_i32_10 = arith.constant 0 : i32
      %18 = tpu.memref_slice %arg13[%arg1, %c0_i32_9, %c0_i32_10] : memref<2x16x256xf32, #tpu.memory_space<vmem>> -> memref<1x16x256xf32, #tpu.memory_space<vmem>>
      %19 = tpu.memref_squeeze %18 : memref<1x16x256xf32, #tpu.memory_space<vmem>> -> memref<16x256xf32, #tpu.memory_space<vmem>>
      %c0_11 = arith.constant 0 : index
      %20 = arith.index_cast %1 : i32 to index
      %21 = vector.load %19[%c0_11, %20] : memref<16x256xf32, #tpu.memory_space<vmem>>, vector<16x128xf32>
      tpu.vector_store %19[%c0_11, %20], %17 {strides = array<i32>} : memref<16x256xf32, #tpu.memory_space<vmem>>, vector<16x128xf32>,
      %22 = vector.extract_strided_slice %17 {offsets = [0, 0], sizes = [8, 128], strides = [1, 1]} : vector<16x128xf32> to vector<8x128xf32>
      %c0_12 = arith.constant 0 : index
      %c0_13 = arith.constant 0 : index
      %23 = vector.load %arg14[%c0_12, %c0_13] : memref<8x128xf32, #tpu.memory_space<vmem>>, vector<8x128xf32>
      %24 = arith.addf %23, %22 : vector<8x128xf32>
      %c0_14 = arith.constant 0 : index
      %c0_15 = arith.constant 0 : index
      %25 = vector.load %arg14[%c0_14, %c0_15] : memref<8x128xf32, #tpu.memory_space<vmem>>, vector<8x128xf32>
      tpu.vector_store %arg14[%c0_14, %c0_15], %24 {strides = array<i32>} : memref<8x128xf32, #tpu.memory_space<vmem>>, vector<8x128xf32>,
      %c0_16 = arith.constant 0 : index
      %c0_17 = arith.constant 0 : index
      %26 = vector.load %arg15[%c0_16, %c0_17] : memref<8x128xf32, #tpu.memory_space<vmem>>, vector<8x128xf32>
      %27 = arith.mulf %22, %22 : vector<8x128xf32>
      %28 = arith.addf %26, %27 : vector<8x128xf32>
      %c0_18 = arith.constant 0 : index
      %c0_19 = arith.constant 0 : index
      %29 = vector.load %arg15[%c0_18, %c0_19] : memref<8x128xf32, #tpu.memory_space<vmem>>, vector<8x128xf32>
      tpu.vector_store %arg15[%c0_18, %c0_19], %28 {strides = array<i32>} : memref<8x128xf32, #tpu.memory_space<vmem>>, vector<8x128xf32>,
    } else {
    }
    %c1_i32 = arith.constant 1 : i32
    %12 = arith.cmpi sge, %arg0, %c1_i32 : i32
    %13 = arith.extui %12 : i1 to i32
    %c0_i32_5 = arith.constant 0 : i32
    %14 = arith.cmpi ne, %13, %c0_i32_5 : i32
    scf.if %14 {
      %c0_i32_6 = arith.constant 0 : i32
      %c0_i32_7 = arith.constant 0 : i32
      %15 = tpu.memref_slice %arg13[%arg1, %c0_i32_6, %c0_i32_7] : memref<2x16x256xf32, #tpu.memory_space<vmem>> -> memref<1x16x256xf32, #tpu.memory_space<vmem>>
      %16 = tpu.memref_squeeze %15 : memref<1x16x256xf32, #tpu.memory_space<vmem>> -> memref<16x256xf32, #tpu.memory_space<vmem>>
      %c0 = arith.constant 0 : index
      %17 = arith.index_cast %1 : i32 to index
      %18 = vector.load %16[%c0, %17] : memref<16x256xf32, #tpu.memory_space<vmem>>, vector<8x128xf32>
      %c0_8 = arith.constant 0 : index
      %c0_9 = arith.constant 0 : index
      %19 = vector.load %arg6[%c0_8, %c0_9] : memref<8x1xf32, #tpu.memory_space<vmem>>, vector<8x1xf32>
      %c0_10 = arith.constant 0 : index
      %c0_11 = arith.constant 0 : index
      %20 = vector.load %arg7[%c0_10, %c0_11] : memref<8x1xf32, #tpu.memory_space<vmem>>, vector<8x1xf32>
      %c0_12 = arith.constant 0 : index
      %c0_13 = arith.constant 0 : index
      %21 = vector.load %arg14[%c0_12, %c0_13] : memref<8x128xf32, #tpu.memory_space<vmem>>, vector<8x128xf32>
      %cst = arith.constant dense<0.000000e+00> : vector<8xf32>
      %22 = vector.multi_reduction <add>, %21, %cst [1] : vector<8x128xf32> to vector<8xf32>
      %23 = vector.shape_cast %22 : vector<8xf32> to vector<8x1xf32>
      %c0_14 = arith.constant 0 : index
      %c0_15 = arith.constant 0 : index
      %24 = vector.load %arg15[%c0_14, %c0_15] : memref<8x128xf32, #tpu.memory_space<vmem>>, vector<8x128xf32>
      %cst_16 = arith.constant dense<0.000000e+00> : vector<8xf32>
      %25 = vector.multi_reduction <add>, %24, %cst_16 [1] : vector<8x128xf32> to vector<8xf32>
      %26 = vector.shape_cast %25 : vector<8xf32> to vector<8x1xf32>
      %cst_17 = arith.constant 0.001953125 : f32
      %27 = vector.broadcast %cst_17 : f32 to vector<8x1xf32>
      %28 = arith.mulf %23, %27 : vector<8x1xf32>
      %cst_18 = arith.constant 0.001953125 : f32
      %29 = vector.broadcast %cst_18 : f32 to vector<8x1xf32>
      %30 = arith.mulf %26, %29 : vector<8x1xf32>
      %31 = arith.mulf %28, %28 : vector<8x1xf32>
      %32 = arith.subf %30, %31 : vector<8x1xf32>
      %cst_19 = arith.constant 9.99999974E-6 : f32
      %33 = vector.broadcast %cst_19 : f32 to vector<8x1xf32>
      %34 = arith.addf %32, %33 : vector<8x1xf32>
      %35 = math.rsqrt %34 : vector<8x1xf32>
      %36 = arith.mulf %19, %35 : vector<8x1xf32>
      %37 = arith.mulf %36, %28 : vector<8x1xf32>
      %38 = arith.subf %20, %37 : vector<8x1xf32>
      %39 = vector.broadcast %36 : vector<8x1xf32> to vector<8x128xf32>
      %40 = arith.mulf %39, %18 : vector<8x128xf32>
      %41 = vector.broadcast %38 : vector<8x1xf32> to vector<8x128xf32>
      %42 = arith.addf %40, %41 : vector<8x128xf32>
      %cst_20 = arith.constant 0.000000e+00 : f32
      %43 = vector.broadcast %cst_20 : f32 to vector<8x128xf32>
      %44 = arith.maximumf %42, %43 : vector<8x128xf32>
      %c1_i32_21 = arith.constant 1 : i32
      %45 = arith.cmpi eq, %arg0, %c1_i32_21 : i32
      %46 = arith.extui %45 : i1 to i32
      %c0_i32_22 = arith.constant 0 : i32
      %47 = arith.cmpi ne, %46, %c0_i32_22 : i32
      scf.if %47 {
        %c0_24 = arith.constant 0 : index
        %c0_25 = arith.constant 0 : index
        %51 = vector.load %arg16[%c0_24, %c0_25] : memref<8x128xf32, #tpu.memory_space<vmem>>, vector<8x128xf32>
        %52 = arith.addf %51, %44 : vector<8x128xf32>
        %c0_26 = arith.constant 0 : index
        %c0_27 = arith.constant 0 : index
        %53 = vector.load %arg16[%c0_26, %c0_27] : memref<8x128xf32, #tpu.memory_space<vmem>>, vector<8x128xf32>
        tpu.vector_store %arg16[%c0_26, %c0_27], %52 {strides = array<i32>} : memref<8x128xf32, #tpu.memory_space<vmem>>, vector<8x128xf32>,
        %c0_28 = arith.constant 0 : index
        %c0_29 = arith.constant 0 : index
        %54 = vector.load %arg17[%c0_28, %c0_29] : memref<8x128xf32, #tpu.memory_space<vmem>>, vector<8x128xf32>
        %55 = arith.mulf %44, %44 : vector<8x128xf32>
        %56 = arith.addf %54, %55 : vector<8x128xf32>
        %c0_30 = arith.constant 0 : index
        %c0_31 = arith.constant 0 : index
        %57 = vector.load %arg17[%c0_30, %c0_31] : memref<8x128xf32, #tpu.memory_space<vmem>>, vector<8x128xf32>
        tpu.vector_store %arg17[%c0_30, %c0_31], %56 {strides = array<i32>} : memref<8x128xf32, #tpu.memory_space<vmem>>, vector<8x128xf32>,
      } else {
      }
      %c2_i32 = arith.constant 2 : i32
      %48 = arith.cmpi sge, %arg0, %c2_i32 : i32
      %49 = arith.extui %48 : i1 to i32
      %c0_i32_23 = arith.constant 0 : i32
      %50 = arith.cmpi ne, %49, %c0_i32_23 : i32
      scf.if %50 {
        %c0_24 = arith.constant 0 : index
        %c0_25 = arith.constant 0 : index
        %51 = vector.load %arg8[%c0_24, %c0_25] : memref<8x1xf32, #tpu.memory_space<vmem>>, vector<8x1xf32>
        %c0_26 = arith.constant 0 : index
        %c0_27 = arith.constant 0 : index
        %52 = vector.load %arg9[%c0_26, %c0_27] : memref<8x1xf32, #tpu.memory_space<vmem>>, vector<8x1xf32>
        %c0_28 = arith.constant 0 : index
        %c0_29 = arith.constant 0 : index
        %53 = vector.load %arg16[%c0_28, %c0_29] : memref<8x128xf32, #tpu.memory_space<vmem>>, vector<8x128xf32>
        %cst_30 = arith.constant dense<0.000000e+00> : vector<8xf32>
        %54 = vector.multi_reduction <add>, %53, %cst_30 [1] : vector<8x128xf32> to vector<8xf32>
        %55 = vector.shape_cast %54 : vector<8xf32> to vector<8x1xf32>
        %c0_31 = arith.constant 0 : index
        %c0_32 = arith.constant 0 : index
        %56 = vector.load %arg17[%c0_31, %c0_32] : memref<8x128xf32, #tpu.memory_space<vmem>>, vector<8x128xf32>
        %cst_33 = arith.constant dense<0.000000e+00> : vector<8xf32>
        %57 = vector.multi_reduction <add>, %56, %cst_33 [1] : vector<8x128xf32> to vector<8xf32>
        %58 = vector.shape_cast %57 : vector<8xf32> to vector<8x1xf32>
        %cst_34 = arith.constant 0.001953125 : f32
        %59 = vector.broadcast %cst_34 : f32 to vector<8x1xf32>
        %60 = arith.mulf %55, %59 : vector<8x1xf32>
        %cst_35 = arith.constant 0.001953125 : f32
        %61 = vector.broadcast %cst_35 : f32 to vector<8x1xf32>
        %62 = arith.mulf %58, %61 : vector<8x1xf32>
        %63 = arith.mulf %60, %60 : vector<8x1xf32>
        %64 = arith.subf %62, %63 : vector<8x1xf32>
        %cst_36 = arith.constant 9.99999974E-6 : f32
        %65 = vector.broadcast %cst_36 : f32 to vector<8x1xf32>
        %66 = arith.addf %64, %65 : vector<8x1xf32>
        %67 = math.rsqrt %66 : vector<8x1xf32>
        %68 = arith.mulf %51, %67 : vector<8x1xf32>
        %69 = arith.mulf %68, %60 : vector<8x1xf32>
        %70 = arith.subf %52, %69 : vector<8x1xf32>
        %71 = vector.broadcast %68 : vector<8x1xf32> to vector<8x128xf32>
        %72 = arith.mulf %71, %44 : vector<8x128xf32>
        %73 = vector.broadcast %70 : vector<8x1xf32> to vector<8x128xf32>
        %74 = arith.addf %72, %73 : vector<8x128xf32>
        %cst_37 = arith.constant 0.000000e+00 : f32
        %75 = vector.broadcast %cst_37 : f32 to vector<8x128xf32>
        %76 = arith.maximumf %74, %75 : vector<8x128xf32>
        %c0_38 = arith.constant 0 : index
        %c0_39 = arith.constant 0 : index
        %77 = vector.load %arg5[%c0_38, %c0_39] : memref<8x8xf32, #tpu.memory_space<vmem>>, vector<8x8xf32>
        %cst_40 = arith.constant dense<0.000000e+00> : vector<8x128xf32>
        %78 = tpu.matmul %77, %76, %cst_40 {dimension_numbers = #tpu.dot_dimension_numbers<[1], [0], [0], [1], [0, 0, 1, 1], [], []>} : vector<8x8xf32>, vector<8x128xf32>, vector<8x128xf32> -> vector<8x128xf32>
        %c2_i32_41 = arith.constant 2 : i32
        %79 = arith.cmpi eq, %arg0, %c2_i32_41 : i32
        %80 = arith.extui %79 : i1 to i32
        %c0_i32_42 = arith.constant 0 : i32
        %81 = arith.cmpi ne, %80, %c0_i32_42 : i32
        scf.if %81 {
          %c0_44 = arith.constant 0 : index
          %c0_45 = arith.constant 0 : index
          %85 = vector.load %arg18[%c0_44, %c0_45] : memref<8x128xf32, #tpu.memory_space<vmem>>, vector<8x128xf32>
          %86 = arith.addf %85, %78 : vector<8x128xf32>
          %c0_46 = arith.constant 0 : index
          %c0_47 = arith.constant 0 : index
          %87 = vector.load %arg18[%c0_46, %c0_47] : memref<8x128xf32, #tpu.memory_space<vmem>>, vector<8x128xf32>
          tpu.vector_store %arg18[%c0_46, %c0_47], %86 {strides = array<i32>} : memref<8x128xf32, #tpu.memory_space<vmem>>, vector<8x128xf32>,
          %c0_48 = arith.constant 0 : index
          %c0_49 = arith.constant 0 : index
          %88 = vector.load %arg19[%c0_48, %c0_49] : memref<8x128xf32, #tpu.memory_space<vmem>>, vector<8x128xf32>
          %89 = arith.mulf %78, %78 : vector<8x128xf32>
          %90 = arith.addf %88, %89 : vector<8x128xf32>
          %c0_50 = arith.constant 0 : index
          %c0_51 = arith.constant 0 : index
          %91 = vector.load %arg19[%c0_50, %c0_51] : memref<8x128xf32, #tpu.memory_space<vmem>>, vector<8x128xf32>
          tpu.vector_store %arg19[%c0_50, %c0_51], %90 {strides = array<i32>} : memref<8x128xf32, #tpu.memory_space<vmem>>, vector<8x128xf32>,
        } else {
        }
        %c3_i32 = arith.constant 3 : i32
        %82 = arith.cmpi eq, %arg0, %c3_i32 : i32
        %83 = arith.extui %82 : i1 to i32
        %c0_i32_43 = arith.constant 0 : i32
        %84 = arith.cmpi ne, %83, %c0_i32_43 : i32
        scf.if %84 {
          %c0_44 = arith.constant 0 : index
          %c0_45 = arith.constant 0 : index
          %85 = vector.load %arg10[%c0_44, %c0_45] : memref<8x1xf32, #tpu.memory_space<vmem>>, vector<8x1xf32>
          %c0_46 = arith.constant 0 : index
          %c0_47 = arith.constant 0 : index
          %86 = vector.load %arg11[%c0_46, %c0_47] : memref<8x1xf32, #tpu.memory_space<vmem>>, vector<8x1xf32>
          %c0_48 = arith.constant 0 : index
          %c0_49 = arith.constant 0 : index
          %87 = vector.load %arg18[%c0_48, %c0_49] : memref<8x128xf32, #tpu.memory_space<vmem>>, vector<8x128xf32>
          %cst_50 = arith.constant dense<0.000000e+00> : vector<8xf32>
          %88 = vector.multi_reduction <add>, %87, %cst_50 [1] : vector<8x128xf32> to vector<8xf32>
          %89 = vector.shape_cast %88 : vector<8xf32> to vector<8x1xf32>
          %c0_51 = arith.constant 0 : index
          %c0_52 = arith.constant 0 : index
          %90 = vector.load %arg19[%c0_51, %c0_52] : memref<8x128xf32, #tpu.memory_space<vmem>>, vector<8x128xf32>
          %cst_53 = arith.constant dense<0.000000e+00> : vector<8xf32>
          %91 = vector.multi_reduction <add>, %90, %cst_53 [1] : vector<8x128xf32> to vector<8xf32>
          %92 = vector.shape_cast %91 : vector<8xf32> to vector<8x1xf32>
          %cst_54 = arith.constant 0.001953125 : f32
          %93 = vector.broadcast %cst_54 : f32 to vector<8x1xf32>
          %94 = arith.mulf %89, %93 : vector<8x1xf32>
          %cst_55 = arith.constant 0.001953125 : f32
          %95 = vector.broadcast %cst_55 : f32 to vector<8x1xf32>
          %96 = arith.mulf %92, %95 : vector<8x1xf32>
          %97 = arith.mulf %94, %94 : vector<8x1xf32>
          %98 = arith.subf %96, %97 : vector<8x1xf32>
          %cst_56 = arith.constant 9.99999974E-6 : f32
          %99 = vector.broadcast %cst_56 : f32 to vector<8x1xf32>
          %100 = arith.addf %98, %99 : vector<8x1xf32>
          %101 = math.rsqrt %100 : vector<8x1xf32>
          %102 = arith.mulf %85, %101 : vector<8x1xf32>
          %103 = arith.mulf %102, %94 : vector<8x1xf32>
          %104 = arith.subf %86, %103 : vector<8x1xf32>
          %c0_i32_57 = arith.constant 0 : i32
          %c0_i32_58 = arith.constant 0 : i32
          %105 = tpu.memref_slice %arg13[%arg1, %c0_i32_57, %c0_i32_58] : memref<2x16x256xf32, #tpu.memory_space<vmem>> -> memref<1x16x256xf32, #tpu.memory_space<vmem>>
          %106 = tpu.memref_squeeze %105 : memref<1x16x256xf32, #tpu.memory_space<vmem>> -> memref<16x256xf32, #tpu.memory_space<vmem>>
          %c8 = arith.constant 8 : index
          %107 = arith.index_cast %1 : i32 to index
          %108 = vector.load %106[%c8, %107] : memref<16x256xf32, #tpu.memory_space<vmem>>, vector<8x128xf32>
          %109 = vector.broadcast %102 : vector<8x1xf32> to vector<8x128xf32>
          %110 = arith.mulf %109, %78 : vector<8x128xf32>
          %111 = vector.broadcast %104 : vector<8x1xf32> to vector<8x128xf32>
          %112 = arith.addf %110, %111 : vector<8x128xf32>
          %113 = arith.addf %112, %108 : vector<8x128xf32>
          %cst_59 = arith.constant 0.000000e+00 : f32
          %114 = vector.broadcast %cst_59 : f32 to vector<8x128xf32>
          %115 = arith.maximumf %113, %114 : vector<8x128xf32>
          %c0_60 = arith.constant 0 : index
          %c0_61 = arith.constant 0 : index
          %116 = vector.load %arg12[%c0_60, %c0_61] : memref<8x128xf32, #tpu.memory_space<vmem>>, vector<8x128xf32>
          tpu.vector_store %arg12[%c0_60, %c0_61], %115 {strides = array<i32>} : memref<8x128xf32, #tpu.memory_space<vmem>>, vector<8x128xf32>,
        } else {
        }
      } else {
      }
    } else {
    }
    return
  }
  func.func @transform_0(%arg0: i32, %arg1: i32, %arg2: i32) -> (i32, i32) {
    %c0_i32 = arith.constant 0 : i32
    %0 = arith.cmpi eq, %arg0, %c0_i32 : i32
    %c0_i32_0 = arith.constant 0 : i32
    %1 = arith.select %0, %arg1, %c0_i32_0 : i32
    %c0_i32_1 = arith.constant 0 : i32
    %2 = arith.select %0, %arg2, %c0_i32_1 : i32
    %c0_i32_2 = arith.constant 0 : i32
    return %1, %2 : i32, i32
  }
  func.func @transform_1(%arg0: i32, %arg1: i32, %arg2: i32) -> (i32, i32) {
    %c0_i32 = arith.constant 0 : i32
    %c0_i32_0 = arith.constant 0 : i32
    %c0_i32_1 = arith.constant 0 : i32
    return %c0_i32, %c0_i32_0 : i32, i32
  }
  func.func @transform_2(%arg0: i32, %arg1: i32, %arg2: i32) -> (i32, i32) {
    %c0_i32 = arith.constant 0 : i32
    %c0_i32_0 = arith.constant 0 : i32
    %c0_i32_1 = arith.constant 0 : i32
    return %c0_i32, %c0_i32_0 : i32, i32
  }
  func.func @transform_3(%arg0: i32, %arg1: i32, %arg2: i32) -> (i32, i32) {
    %c0_i32 = arith.constant 0 : i32
    %c0_i32_0 = arith.constant 0 : i32
    %c0_i32_1 = arith.constant 0 : i32
    return %c0_i32, %c0_i32_0 : i32, i32
  }
  func.func @transform_4(%arg0: i32, %arg1: i32, %arg2: i32) -> (i32, i32) {
    %c0_i32 = arith.constant 0 : i32
    %c0_i32_0 = arith.constant 0 : i32
    %c0_i32_1 = arith.constant 0 : i32
    return %c0_i32, %c0_i32_0 : i32, i32
  }
  func.func @transform_5(%arg0: i32, %arg1: i32, %arg2: i32) -> (i32, i32) {
    %c0_i32 = arith.constant 0 : i32
    %c0_i32_0 = arith.constant 0 : i32
    %c0_i32_1 = arith.constant 0 : i32
    return %c0_i32, %c0_i32_0 : i32, i32
  }
  func.func @transform_6(%arg0: i32, %arg1: i32, %arg2: i32) -> (i32, i32) {
    %c0_i32 = arith.constant 0 : i32
    %c0_i32_0 = arith.constant 0 : i32
    %c0_i32_1 = arith.constant 0 : i32
    return %c0_i32, %c0_i32_0 : i32, i32
  }
  func.func @transform_7(%arg0: i32, %arg1: i32, %arg2: i32) -> (i32, i32) {
    %c0_i32 = arith.constant 0 : i32
    %c0_i32_0 = arith.constant 0 : i32
    %c0_i32_1 = arith.constant 0 : i32
    return %c0_i32, %c0_i32_0 : i32, i32
  }
  func.func @transform_8(%arg0: i32, %arg1: i32, %arg2: i32) -> (i32, i32) {
    %c0_i32 = arith.constant 0 : i32
    %c0_i32_0 = arith.constant 0 : i32
    %c0_i32_1 = arith.constant 0 : i32
    return %c0_i32, %c0_i32_0 : i32, i32
  }
  func.func @transform_9(%arg0: i32, %arg1: i32, %arg2: i32) -> (i32, i32) {
    %c3_i32 = arith.constant 3 : i32
    %0 = arith.cmpi eq, %arg0, %c3_i32 : i32
    %c0_i32 = arith.constant 0 : i32
    %1 = arith.select %0, %arg1, %c0_i32 : i32
    %c0_i32_0 = arith.constant 0 : i32
    %2 = arith.select %0, %arg2, %c0_i32_0 : i32
    %c0_i32_1 = arith.constant 0 : i32
    return %1, %2 : i32, i32
  }
}

</mosaic_0001>

<llo_original>
// kernel: tpu_custom_call.1
$region0: #{tpu_custom_call.1}
  #allocation0 [shape = 'u32[]', space=smem, size = 0x4, offset = 0x4, fixed_abs, tag = 'smem constant byte address 0x4 - core index']
  #allocation1 [shape = 'u32[72,128]{1,0:T(1,128)}', space=vmem, size = 0x9000, scoped, tag = 'internal scratch']
  #allocation2 [shape = 'f32[2,16,256]{2,1,0:T(8,128)}', space=vmem, size = 0x8000, scoped, tag = 'scratch operand']
  #allocation3 [shape = 'f32[8,128]{1,0:T(8,128)}', space=vmem, size = 0x1000, scoped, tag = 'scratch operand']
  #allocation4 [shape = 'f32[8,128]{1,0:T(8,128)}', space=vmem, size = 0x1000, scoped, tag = 'scratch operand']
  #allocation5 [shape = 'f32[8,128]{1,0:T(8,128)}', space=vmem, size = 0x1000, scoped, tag = 'scratch operand']
  #allocation6 [shape = 'f32[8,128]{1,0:T(8,128)}', space=vmem, size = 0x1000, scoped, tag = 'scratch operand']
  #allocation7 [shape = 'f32[8,128]{1,0:T(8,128)}', space=vmem, size = 0x1000, scoped, tag = 'scratch operand']
  #allocation8 [shape = 'f32[8,128]{1,0:T(8,128)}', space=vmem, size = 0x1000, scoped, tag = 'scratch operand']
  %s0 = inlined_call_operand.hbm [shape: f32[32,256], index: 0, kind: input, shape index: {}]
  %s1 = inlined_call_operand.vmem [shape: f32[16,16], index: 1, kind: input, shape index: {}]
  %s2 = inlined_call_operand.vmem [shape: f32[8,8], index: 2, kind: input, shape index: {}]
  %s3 = inlined_call_operand.vmem [shape: f32[8,1], index: 3, kind: input, shape index: {}]
  %s4 = inlined_call_operand.vmem [shape: f32[8,1], index: 4, kind: input, shape index: {}]
  %s5 = inlined_call_operand.vmem [shape: f32[8,1], index: 5, kind: input, shape index: {}]
  %s6 = inlined_call_operand.vmem [shape: f32[8,1], index: 6, kind: input, shape index: {}]
  %s7 = inlined_call_operand.vmem [shape: f32[8,1], index: 7, kind: input, shape index: {}]
  %s8 = inlined_call_operand.vmem [shape: f32[8,1], index: 8, kind: input, shape index: {}]
  %s9 = inlined_call_operand.hbm [shape: f32[16,256], index: 9, kind: output, shape index: {}]
  %s10 = sld [smem:[#allocation0]]
  $region101: #{tpu_custom_call.1} parent=0
    _
  %s12 = ssub.s32 1, %s10
  %s13 = scalar_select 0, %s12, %s10
  $region1: #{tpu_custom_call.1} parent=0
    #allocation9 [shape = 'u8[16384]{0}', space=vmem, size = 0x4000, scoped, tag = 'input window, operand 0']
    #allocation10 [shape = 's32[2]{0}', space=sflag, size = 0x8, scoped, tag = 'scoped memory for tpu_custom_call.1']
    #allocation11 [shape = 's32[2]{0}', space=sflag, size = 0x8, scoped, tag = 'scoped memory for tpu_custom_call.1']
    #allocation12 [shape = 'u8[8192]{0}', space=vmem, size = 0x2000, scoped, tag = 'output window, operand 0']
    %14 = vsyncpa [#allocation10], 0
    %s15 = scalar_lea.sflag [#allocation10], 1
    %16 = vsyncpa %s15, 0
    %17 = vsyncpa [#allocation11], 0
    %s18 = scalar_lea.sflag [#allocation11], 1
    %19 = vsyncpa %s18, 0
    loop: start=0, step=1, limit=18
    $region2: #{tpu_custom_call.1} parent=1 // loop_pre_header
      _
    $region3: #{tpu_custom_call.1} parent=1 // loop_header
      %s21 = sphi 0, %s25
      %p22 = scmp.ge.s32.totalorder %s21, 18
      %s28 = sphi 0, %s47
      %s29 = sphi 0, %s43
      %s30 = sphi 0, %s39
      %s31 = sphi 0, %s28
      %s32 = sphi 0, %s29
      %s33 = sphi 0, %s30
      %s34 = sphi 0, %s31
      %s35 = sphi 0, %s32
      %s36 = sphi 0, %s33
      %s58 = sphi 0, %s60
      %s61 = sphi 0, %s58
      %s62 = sphi 0, %s61
      %s78 = sphi 0, %s62
      %s82 = sphi 0, %s82
      %s84 = sphi 0, %s82
      %s85 = sphi 0, %s84
      %s99 = sphi 0, %s85
      %s103 = sphi 0, %s103
      %s105 = sphi 0, %s103
      %s106 = sphi 0, %s105
      %s120 = sphi 0, %s106
      %s124 = sphi 0, %s124
      %s126 = sphi 0, %s124
      %s127 = sphi 0, %s126
      %s141 = sphi 0, %s127
      %s145 = sphi 0, %s145
      %s147 = sphi 0, %s145
      %s148 = sphi 0, %s147
      %s162 = sphi 0, %s148
      %s166 = sphi 0, %s166
      %s168 = sphi 0, %s166
      %s169 = sphi 0, %s168
      %s183 = sphi 0, %s169
      %s187 = sphi 0, %s187
      %s189 = sphi 0, %s187
      %s190 = sphi 0, %s189
      %s204 = sphi 0, %s190
      %s208 = sphi 0, %s208
      %s210 = sphi 0, %s208
      %s211 = sphi 0, %s210
      %s225 = sphi 0, %s211
      %s229 = sphi 0, %s229
      %s231 = sphi 0, %s229
      %s232 = sphi 0, %s231
      %s246 = sphi 0, %s232
      %s260 = sphi 0, %s262
      %s263 = sphi 0, %s260
      %s264 = sphi 0, %s263
      %s280 = sphi 0, %s264
    $region4: #{tpu_custom_call.1} parent=1 // loop_header_branch
      %24 = sbr.rel (%p22) target = $region8
    $region5: #{tpu_custom_call.1} parent=1 // loop_body
      %s26 = ssub.s32 %s21, 1
      %s27 = ssub.s32 %s21, 2
      %s37 = sadd.s32 1, %s30
      %p38 = scmp.ge.s32.totalorder %s37, 2
      %s39 = scalar_select %p38, 0, %s37
      %s40 = sadd.s32 1, %s29
      %s41 = scalar_select %p38, %s40, %s29
      %p42 = scmp.ge.s32.totalorder %s41, 2
      %s43 = scalar_select %p42, 0, %s41
      %s44 = sadd.s32 1, %s28
      %s45 = scalar_select %p42, %s44, %s28
      %p46 = scmp.ge.s32.totalorder %s45, 4
      %s47 = scalar_select %p46, 0, %s45
      %p48 = scmp.eq.s32.totalorder %s28, 0
      %s49 = scalar_select %p48, %s29, 0
      %s50 = scalar_select %p48, %s30, 0
      %p51 = scmp.eq.s32.totalorder %s47, 0
      %s52 = scalar_select %p51, %s43, 0
      %s53 = scalar_select %p51, %s39, 0
      %s54 = ssub.s32 %s49, %s52
      %s55 = ssub.s32 %s50, %s53
      %s56 = sor.u32 %s54, %s55
      %p57 = scmp.eq.s32.totalorder %s56, 0
      %s59 = sadd.s32 %s58, 1
      %s60 = scalar_select %p57, %s58, %s59
      %p63 = pneg %p57
      %p64 = scmp.eq.s32.totalorder %s21, 15
      %p65 = por %p63, %p64
      %p66 = scmp.ne.s32.totalorder %s58, %s61
      %p67 = scmp.eq.s32.totalorder %s21, 0
      %p68 = por %p66, %p67
      %p69 = scmp.ne.s32.totalorder %s58, %s61
      %p70 = scmp.eq.s32.totalorder %s26, 15
      %p71 = por %p69, %p70
      %p72 = scmp.ne.s32.totalorder %s61, %s62
      %p73 = scmp.eq.s32.totalorder %s26, 0
      %p74 = por %p72, %p73
      %p75 = scmp.ne.s32.totalorder %s61, %s62
      %p76 = scmp.eq.s32.totalorder %s27, 15
      %p77 = por %p75, %p76
      %p79 = scmp.ne.s32.totalorder %s62, %s78
      %p80 = scmp.eq.s32.totalorder %s27, 0
      %p81 = por %p79, %p80
      %s83 = sadd.s32 %s82, 1
      %p86 = scmp.eq.s32.totalorder %s21, 15
      %p87 = scmp.ne.s32.totalorder %s82, %s84
      %p88 = scmp.eq.s32.totalorder %s21, 0
      %p89 = por %p87, %p88
      %p90 = scmp.ne.s32.totalorder %s82, %s84
      %p91 = scmp.eq.s32.totalorder %s26, 15
      %p92 = por %p90, %p91
      %p93 = scmp.ne.s32.totalorder %s84, %s85
      %p94 = scmp.eq.s32.totalorder %s26, 0
      %p95 = por %p93, %p94
      %p96 = scmp.ne.s32.totalorder %s84, %s85
      %p97 = scmp.eq.s32.totalorder %s27, 15
      %p98 = por %p96, %p97
      %p100 = scmp.ne.s32.totalorder %s85, %s99
      %p101 = scmp.eq.s32.totalorder %s27, 0
      %p102 = por %p100, %p101
      %s104 = sadd.s32 %s103, 1
      %p107 = scmp.eq.s32.totalorder %s21, 15
      %p108 = scmp.ne.s32.totalorder %s103, %s105
      %p109 = scmp.eq.s32.totalorder %s21, 0
      %p110 = por %p108, %p109
      %p111 = scmp.ne.s32.totalorder %s103, %s105
      %p112 = scmp.eq.s32.totalorder %s26, 15
      %p113 = por %p111, %p112
      %p114 = scmp.ne.s32.totalorder %s105, %s106
      %p115 = scmp.eq.s32.totalorder %s26, 0
      %p116 = por %p114, %p115
      %p117 = scmp.ne.s32.totalorder %s105, %s106
      %p118 = scmp.eq.s32.totalorder %s27, 15
      %p119 = por %p117, %p118
      %p121 = scmp.ne.s32.totalorder %s106, %s120
      %p122 = scmp.eq.s32.totalorder %s27, 0
      %p123 = por %p121, %p122
      %s125 = sadd.s32 %s124, 1
      %p128 = scmp.eq.s32.totalorder %s21, 15
      %p129 = scmp.ne.s32.totalorder %s124, %s126
      %p130 = scmp.eq.s32.totalorder %s21, 0
      %p131 = por %p129, %p130
      %p132 = scmp.ne.s32.totalorder %s124, %s126
      %p133 = scmp.eq.s32.totalorder %s26, 15
      %p134 = por %p132, %p133
      %p135 = scmp.ne.s32.totalorder %s126, %s127
      %p136 = scmp.eq.s32.totalorder %s26, 0
      %p137 = por %p135, %p136
      %p138 = scmp.ne.s32.totalorder %s126, %s127
      %p139 = scmp.eq.s32.totalorder %s27, 15
      %p140 = por %p138, %p139
      %p142 = scmp.ne.s32.totalorder %s127, %s141
      %p143 = scmp.eq.s32.totalorder %s27, 0
      %p144 = por %p142, %p143
      %s146 = sadd.s32 %s145, 1
      %p149 = scmp.eq.s32.totalorder %s21, 15
      %p150 = scmp.ne.s32.totalorder %s145, %s147
      %p151 = scmp.eq.s32.totalorder %s21, 0
      %p152 = por %p150, %p151
      %p153 = scmp.ne.s32.totalorder %s145, %s147
      %p154 = scmp.eq.s32.totalorder %s26, 15
      %p155 = por %p153, %p154
      %p156 = scmp.ne.s32.totalorder %s147, %s148
      %p157 = scmp.eq.s32.totalorder %s26, 0
      %p158 = por %p156, %p157
      %p159 = scmp.ne.s32.totalorder %s147, %s148
      %p160 = scmp.eq.s32.totalorder %s27, 15
      %p161 = por %p159, %p160
      %p163 = scmp.ne.s32.totalorder %s148, %s162
      %p164 = scmp.eq.s32.totalorder %s27, 0
      %p165 = por %p163, %p164
      %s167 = sadd.s32 %s166, 1
      %p170 = scmp.eq.s32.totalorder %s21, 15
      %p171 = scmp.ne.s32.totalorder %s166, %s168
      %p172 = scmp.eq.s32.totalorder %s21, 0
      %p173 = por %p171, %p172
      %p174 = scmp.ne.s32.totalorder %s166, %s168
      %p175 = scmp.eq.s32.totalorder %s26, 15
      %p176 = por %p174, %p175
      %p177 = scmp.ne.s32.totalorder %s168, %s169
      %p178 = scmp.eq.s32.totalorder %s26, 0
      %p179 = por %p177, %p178
      %p180 = scmp.ne.s32.totalorder %s168, %s169
      %p181 = scmp.eq.s32.totalorder %s27, 15
      %p182 = por %p180, %p181
      %p184 = scmp.ne.s32.totalorder %s169, %s183
      %p185 = scmp.eq.s32.totalorder %s27, 0
      %p186 = por %p184, %p185
      %s188 = sadd.s32 %s187, 1
      %p191 = scmp.eq.s32.totalorder %s21, 15
      %p192 = scmp.ne.s32.totalorder %s187, %s189
      %p193 = scmp.eq.s32.totalorder %s21, 0
      %p194 = por %p192, %p193
      %p195 = scmp.ne.s32.totalorder %s187, %s189
      %p196 = scmp.eq.s32.totalorder %s26, 15
      %p197 = por %p195, %p196
      %p198 = scmp.ne.s32.totalorder %s189, %s190
      %p199 = scmp.eq.s32.totalorder %s26, 0
      %p200 = por %p198, %p199
      %p201 = scmp.ne.s32.totalorder %s189, %s190
      %p202 = scmp.eq.s32.totalorder %s27, 15
      %p203 = por %p201, %p202
      %p205 = scmp.ne.s32.totalorder %s190, %s204
      %p206 = scmp.eq.s32.totalorder %s27, 0
      %p207 = por %p205, %p206
      %s209 = sadd.s32 %s208, 1
      %p212 = scmp.eq.s32.totalorder %s21, 15
      %p213 = scmp.ne.s32.totalorder %s208, %s210
      %p214 = scmp.eq.s32.totalorder %s21, 0
      %p215 = por %p213, %p214
      %p216 = scmp.ne.s32.totalorder %s208, %s210
      %p217 = scmp.eq.s32.totalorder %s26, 15
      %p218 = por %p216, %p217
      %p219 = scmp.ne.s32.totalorder %s210, %s211
      %p220 = scmp.eq.s32.totalorder %s26, 0
      %p221 = por %p219, %p220
      %p222 = scmp.ne.s32.totalorder %s210, %s211
      %p223 = scmp.eq.s32.totalorder %s27, 15
      %p224 = por %p222, %p223
      %p226 = scmp.ne.s32.totalorder %s211, %s225
      %p227 = scmp.eq.s32.totalorder %s27, 0
      %p228 = por %p226, %p227
      %s230 = sadd.s32 %s229, 1
      %p233 = scmp.eq.s32.totalorder %s21, 15
      %p234 = scmp.ne.s32.totalorder %s229, %s231
      %p235 = scmp.eq.s32.totalorder %s21, 0
      %p236 = por %p234, %p235
      %p237 = scmp.ne.s32.totalorder %s229, %s231
      %p238 = scmp.eq.s32.totalorder %s26, 15
      %p239 = por %p237, %p238
      %p240 = scmp.ne.s32.totalorder %s231, %s232
      %p241 = scmp.eq.s32.totalorder %s26, 0
      %p242 = por %p240, %p241
      %p243 = scmp.ne.s32.totalorder %s231, %s232
      %p244 = scmp.eq.s32.totalorder %s27, 15
      %p245 = por %p243, %p244
      %p247 = scmp.ne.s32.totalorder %s232, %s246
      %p248 = scmp.eq.s32.totalorder %s27, 0
      %p249 = por %p247, %p248
      %p250 = scmp.eq.s32.totalorder %s28, 3
      %s251 = scalar_select %p250, %s29, 0
      %s252 = scalar_select %p250, %s30, 0
      %p253 = scmp.eq.s32.totalorder %s47, 3
      %s254 = scalar_select %p253, %s43, 0
      %s255 = scalar_select %p253, %s39, 0
      %s256 = ssub.s32 %s251, %s254
      %s257 = ssub.s32 %s252, %s255
      %s258 = sor.u32 %s256, %s257
      %p259 = scmp.eq.s32.totalorder %s258, 0
      %s261 = sadd.s32 %s260, 1
      %s262 = scalar_select %p259, %s260, %s261
      %p265 = pneg %p259
      %p266 = scmp.eq.s32.totalorder %s21, 15
      %p267 = por %p265, %p266
      %p268 = scmp.ne.s32.totalorder %s260, %s263
      %p269 = scmp.eq.s32.totalorder %s21, 0
      %p270 = por %p268, %p269
      %p271 = scmp.ne.s32.totalorder %s260, %s263
      %p272 = scmp.eq.s32.totalorder %s26, 15
      %p273 = por %p271, %p272
      %p274 = scmp.ne.s32.totalorder %s263, %s264
      %p275 = scmp.eq.s32.totalorder %s26, 0
      %p276 = por %p274, %p275
      %p277 = scmp.ne.s32.totalorder %s263, %s264
      %p278 = scmp.eq.s32.totalorder %s27, 15
      %p279 = por %p277, %p278
      %p281 = scmp.ne.s32.totalorder %s264, %s280
      %p282 = scmp.eq.s32.totalorder %s27, 0
      %p283 = por %p281, %p282
      %p284 = scmp.le.s32.totalorder 1, %s21
      %p285 = scmp.lt.s32.totalorder %s21, 17
      %p286 = pnand %p284, %p285
      %p287 = pneg %p286
      // Predicated region
      $region9: #{tpu_custom_call.1} parent=5 // pred_check
        _
      $region10: #{tpu_custom_call.1} parent=5 // pred_check_branch
        %289 = sbr.rel (%p286) target = $region12
      $region11: #{tpu_custom_call.1} parent=5 // pred_region
        %s290 = ssub.s32 %s21, 1
        // Predicated region
        $region13: #{tpu_custom_call.1} parent=11 // pred_check
          %p291 = pneg %p95
        $region14: #{tpu_custom_call.1} parent=11 // pred_check_branch
          %293 = sbr.rel (%p291) target = $region16
        $region15: #{tpu_custom_call.1} parent=11 // pred_region
          _
        $region16: #{tpu_custom_call.1} parent=11 // pred_fallthru
          _
        // Predicated region
        $region17: #{tpu_custom_call.1} parent=11 // pred_check
          %p294 = pneg %p116
        $region18: #{tpu_custom_call.1} parent=11 // pred_check_branch
          %296 = sbr.rel (%p294) target = $region20
        $region19: #{tpu_custom_call.1} parent=11 // pred_region
          _
        $region20: #{tpu_custom_call.1} parent=11 // pred_fallthru
          _
        // Predicated region
        $region21: #{tpu_custom_call.1} parent=11 // pred_check
          %p297 = pneg %p137
        $region22: #{tpu_custom_call.1} parent=11 // pred_check_branch
          %299 = sbr.rel (%p297) target = $region24
        $region23: #{tpu_custom_call.1} parent=11 // pred_region
          _
        $region24: #{tpu_custom_call.1} parent=11 // pred_fallthru
          _
        // Predicated region
        $region25: #{tpu_custom_call.1} parent=11 // pred_check
          %p300 = pneg %p158
        $region26: #{tpu_custom_call.1} parent=11 // pred_check_branch
          %302 = sbr.rel (%p300) target = $region28
        $region27: #{tpu_custom_call.1} parent=11 // pred_region
          _
        $region28: #{tpu_custom_call.1} parent=11 // pred_fallthru
          _
        // Predicated region
        $region29: #{tpu_custom_call.1} parent=11 // pred_check
          %p303 = pneg %p179
        $region30: #{tpu_custom_call.1} parent=11 // pred_check_branch
          %305 = sbr.rel (%p303) target = $region32
        $region31: #{tpu_custom_call.1} parent=11 // pred_region
          _
        $region32: #{tpu_custom_call.1} parent=11 // pred_fallthru
          _
        // Predicated region
        $region33: #{tpu_custom_call.1} parent=11 // pred_check
          %p306 = pneg %p200
        $region34: #{tpu_custom_call.1} parent=11 // pred_check_branch
          %308 = sbr.rel (%p306) target = $region36
        $region35: #{tpu_custom_call.1} parent=11 // pred_region
          _
        $region36: #{tpu_custom_call.1} parent=11 // pred_fallthru
          _
        // Predicated region
        $region37: #{tpu_custom_call.1} parent=11 // pred_check
          %p309 = pneg %p221
        $region38: #{tpu_custom_call.1} parent=11 // pred_check_branch
          %311 = sbr.rel (%p309) target = $region40
        $region39: #{tpu_custom_call.1} parent=11 // pred_region
          _
        $region40: #{tpu_custom_call.1} parent=11 // pred_fallthru
          _
        // Predicated region
        $region41: #{tpu_custom_call.1} parent=11 // pred_check
          %p312 = pneg %p242
        $region42: #{tpu_custom_call.1} parent=11 // pred_check_branch
          %314 = sbr.rel (%p312) target = $region44
        $region43: #{tpu_custom_call.1} parent=11 // pred_region
          _
        $region44: #{tpu_custom_call.1} parent=11 // pred_fallthru
          _
      $region12: #{tpu_custom_call.1} parent=5 // pred_fallthru
        _
      %p315 = scmp.lt.s32.totalorder %s21, 16
      // Predicated region
      $region45: #{tpu_custom_call.1} parent=5 // pred_check
        %p316 = pneg %p315
      $region46: #{tpu_custom_call.1} parent=5 // pred_check_branch
        %318 = sbr.rel (%p316) target = $region48
      $region47: #{tpu_custom_call.1} parent=5 // pred_region
        // Predicated region
        $region49: #{tpu_custom_call.1} parent=47 // pred_check
          %p319 = pneg %p68
        $region50: #{tpu_custom_call.1} parent=47 // pred_check_branch
          %321 = sbr.rel (%p319) target = $region52
        $region51: #{tpu_custom_call.1} parent=47 // pred_region
          %s322 = sand.u32 %s58, 1
          %s323 = scalar_lea.sflag [#allocation10], %s322
          %s324 = sand.u32 %s58, 1
          %s325 = smul.addr %s324, 16
          %s326 = scalar_lea.vmem [#allocation9], %s325
          %p327 = scmp.eq.s32.totalorder %s28, 0
          %s328 = scalar_select %p327, %s29, 0
          %s329 = scalar_select %p327, %s30, 0
          %s330 = smul.u32 2, %s328
          %332 = vsyncadd %s323, 0
          %s333 = smul.addr %s330, 2
          %s334 = sadd.s32 %s329, %s333
          %s335 = smul.addr %s334, 8
          %s336 = scalar_lea.hbm %s0, %s335
          %s337 = sshll.u32 %s336, 4
          %s338 = int_to_ptr.hbm [resolvable:$true] %s337
          %s339 = sshll.u32 %s326, 4
          %s340 = int_to_ptr.vmem [resolvable:$true] %s339
          %345 = dma.hbm_to_vmem [thread:$0]  %s338, 256, %s340, %s323, 256, 128, 8
        $region52: #{tpu_custom_call.1} parent=47 // pred_fallthru
          _
      $region48: #{tpu_custom_call.1} parent=5 // pred_fallthru
        _
      %p346 = scmp.le.s32.totalorder 1, %s21
      %p347 = scmp.lt.s32.totalorder %s21, 17
      %p348 = pnand %p346, %p347
      %p349 = pneg %p348
      // Predicated region
      $region53: #{tpu_custom_call.1} parent=5 // pred_check
        _
      $region54: #{tpu_custom_call.1} parent=5 // pred_check_branch
        %351 = sbr.rel (%p348) target = $region56
      $region55: #{tpu_custom_call.1} parent=5 // pred_region
        %s352 = ssub.s32 %s21, 1
        %s353 = sand.u32 %s61, 1
        %s354 = scalar_lea.sflag [#allocation10], %s353
        %s355 = sand.u32 %s61, 1
        %s356 = smul.addr %s355, 16
        %s357 = scalar_lea.vmem [#allocation9], %s356
        // Predicated region
        $region57: #{tpu_custom_call.1} parent=55 // pred_check
          %p358 = pneg %p74
        $region58: #{tpu_custom_call.1} parent=55 // pred_check_branch
          %360 = sbr.rel (%p358) target = $region60
        $region59: #{tpu_custom_call.1} parent=55 // pred_region
          %362 = dma.done %s354, 256
        $region60: #{tpu_custom_call.1} parent=55 // pred_fallthru
          _
        %s363 = sand.u32 %s61, 1
        %s364 = scalar_lea.sflag [#allocation10], %s363
        %s365 = sand.u32 %s61, 1
        %s366 = smul.addr %s365, 16
        %s367 = scalar_lea.vmem [#allocation9], %s366
        %p368 = pneg %p74
        %p369 = pneg %p71
        %p370 = pneg %p95
        %p371 = pneg %p92
        %p372 = pneg %p116
        %p373 = pneg %p113
        %p374 = pneg %p137
        %p375 = pneg %p134
        %p376 = pneg %p158
        %p377 = pneg %p155
        %p378 = pneg %p179
        %p379 = pneg %p176
        %p380 = pneg %p200
        %p381 = pneg %p197
        %p382 = pneg %p221
        %p383 = pneg %p218
        %p384 = pneg %p242
        %p385 = pneg %p239
        %p386 = pneg %p276
        %p387 = pneg %p273
        %s388 = sand.u32 %s263, 1
        %s389 = scalar_lea.sflag [#allocation11], %s388
        %s390 = sand.u32 %s263, 1
        %s391 = smul.addr %s390, 8
        %s392 = scalar_lea.vmem [#allocation12], %s391
        %p393 = scmp.eq.s32.totalorder %s31, 0
        %s394 = scalar_select %p393, %s32, 0
        %s395 = scalar_select %p393, %s33, 0
        %s396 = smul.u32 2, %s394
        %p397 = scmp.eq.s32.totalorder %s31, 3
        %s398 = scalar_select %p397, %s32, 0
        %s399 = scalar_select %p397, %s33, 0
        %s400 = smul.u32 %s33, 128
        %p401 = scmp.eq.s32.totalorder %s31, 0
        %p402 = scmp.eq.s32.totalorder %s32, 0
        %p403 = scmp.eq.s32.totalorder %s33, 0
        %p404 = pnand %p402, %p403
        %p405 = pneg %p404
        %p406 = pnand %p401, %p405
        %p407 = pneg %p406
        // Predicated region
        $region61: #{tpu_custom_call.1} parent=55 // pred_check
          _
        $region62: #{tpu_custom_call.1} parent=55 // pred_check_branch
          %409 = sbr.rel (%p406) target = $region64
        $region63: #{tpu_custom_call.1} parent=55 // pred_region
          %410 = vst [vmem:[#allocation3] sm:$0xff] 0.0
          %411 = vst [vmem:[#allocation4] sm:$0xff] 0.0
          %412 = vst [vmem:[#allocation5] sm:$0xff] 0.0
          %413 = vst [vmem:[#allocation6] sm:$0xff] 0.0
          %414 = vst [vmem:[#allocation7] sm:$0xff] 0.0
          %415 = vst [vmem:[#allocation8] sm:$0xff] 0.0
        $region64: #{tpu_custom_call.1} parent=55 // pred_fallthru
          _
        // Predicated region
        $region65: #{tpu_custom_call.1} parent=55 // pred_check
          %p416 = pneg %p401
        $region66: #{tpu_custom_call.1} parent=55 // pred_check_branch
          %418 = sbr.rel (%p416) target = $region68
        $region67: #{tpu_custom_call.1} parent=55 // pred_region
          %v419 = vld [vmem:[%s357] sm:$0xff]
          %v420 = vld [vmem:[%s357 + $0x8] sm:$0xff]
          %v421 = vld [vmem:[%s1] sm:$0xff]
          %v422 = vld [vmem:[%s1 + $0x8] sm:$0xff]
          %vm423 = vcmask 130048
          %v425 = vsel %vm423, %v421, 0
          %v428 = vsel %vm423, %v422, 0
          %430 = vmatpush.msra.mxu0 0.0
          %431 = vmatpush.msra.mxu0 0.0
          %432 = vmatpush.msra.mxu0 0.0
          %433 = vmatpush.msra.mxu0 0.0
          %434 = vmatpush.msra.mxu0 0.0
          %435 = vmatpush.msra.mxu0 0.0
          %436 = vmatpush.msra.mxu0 0.0
          %437 = vmatpush.msra.mxu0 0.0
          %438 = vmatpush.msra.mxu0 0.0
          %439 = vmatpush.msra.mxu0 0.0
          %440 = vmatpush.msra.mxu0 0.0
          %441 = vmatpush.msra.mxu0 0.0
          %442 = vmatpush.msra.mxu0 0.0
          %443 = vmatpush.msra.mxu0 0.0
          %444 = vmatpush.msra.mxu0 %v420
          %445 = vmatpush.msra.mxu0 %v419
          %446 = vmatmul.f32.gmra.mxu0 %v425
          %v447 = vpop.f32.mrf.mxu0
          %v448 = vadd.f32 0.0, %v447
          %449 = vmatmul.f32.gmra.mxu0 %v428
          %v450 = vpop.f32.mrf.mxu0
          %v451 = vadd.f32 0.0, %v450
          %452 = vdwg.mxu0
          %s453 = smul.u32 %s32, 4
          %s454 = smul.addr %s453, 8
          %s455 = scalar_lea.vmem [#allocation2], %s454
          %s456 = sshra.s32 %s400, 7
          %s457 = sand.u32 %s400, 127
          %s458 = smul.addr %s456, 8
          %s459 = scalar_lea.vmem %s455, %s458 [#allocation2]
          %460 = vst [vmem:[%s459] sm:$0xff] %v448
          %461 = vst [vmem:[%s459 + $0x10] sm:$0xff] %v451
          %v462 = vld [vmem:[#allocation3] sm:$0xff]
          %v463 = vadd.f32 %v462, %v448
          %464 = vst [vmem:[#allocation3] sm:$0xff] %v463
          %v465 = vld [vmem:[#allocation4] sm:$0xff]
          %v466 = vmul.f32 %v448, %v448
          %v467 = vadd.f32 %v465, %v466
          %468 = vst [vmem:[#allocation4] sm:$0xff] %v467
        $region68: #{tpu_custom_call.1} parent=55 // pred_fallthru
          _
        %p469 = scmp.ge.s32.totalorder %s31, 1
        // Predicated region
        $region69: #{tpu_custom_call.1} parent=55 // pred_check
          %p470 = pneg %p469
        $region70: #{tpu_custom_call.1} parent=55 // pred_check_branch
          %472 = sbr.rel (%p470) target = $region72
        $region71: #{tpu_custom_call.1} parent=55 // pred_region
          %s473 = smul.u32 %s32, 4
          %s474 = smul.addr %s473, 8
          %s475 = scalar_lea.vmem [#allocation2], %s474
          %s476 = sshra.s32 %s400, 7
          %s477 = sand.u32 %s400, 127
          %s478 = smul.addr %s476, 8
          %s479 = scalar_lea.vmem %s475, %s478 [#allocation2]
          %v480 = vld [vmem:[%s479] sm:$0xff]
          %v481 = vld [vmem:[%s3] sm:$0xff]
          %v482 = vld [vmem:[%s4] sm:$0xff]
          %v483 = vld [vmem:[#allocation3] sm:$0xff]
          %484 = vadd.xlane.f32.xlu0 %v483
          %v485 = vpop.xlane.xlu0 %484
          %v486 = vld [vmem:[#allocation4] sm:$0xff]
          %487 = vadd.xlane.f32.xlu0 %v486
          %v488 = vpop.xlane.xlu0 %487
          %v489 = vmul.f32 %v485, 0.001953125
          %v490 = vmul.f32 %v488, 0.001953125
          %v491 = vmul.f32 %v489, %v489
          %v492 = vsub.f32 %v490, %v491
          %v493 = vadd.f32 %v492, 1e-05
          %v494 = vrsqrt.pop %v493
          %v495 = vmul.f32 %v494, %v493
          %v496 = vmul.f32 %v495, %v494
          %v497 = vmul.f32 0.5, %v496
          %v498 = vsub.f32 1.5, %v497
          %v499 = vmul.f32 %v494, %v498
          %vm500 = vweird.f32 %v493
          %vm501 = vweird.f32 %v494
          %vm502 = vmor %vm500, %vm501
          %v503 = vsel %vm502, %v494, %v499
          %v504 = vmul.f32 %v481, %v503
          %v505 = vmul.f32 %v504, %v489
          %v506 = vsub.f32 %v482, %v505
          %508 = vset.pattern.permute.xlu0 0
          %509 = vperm.xlu0 %508, %v504
          %v510 = vpop.permute.xlu0 %509
          %v512 = vmul.f32 %v510, %v480
          %514 = vset.pattern.permute.xlu0 0
          %515 = vperm.xlu0 %514, %v506
          %v516 = vpop.permute.xlu0 %515
          %v518 = vadd.f32 %v512, %v516
          %v519 = vmax.f32 %v518, 0.0
          %p520 = scmp.eq.s32.totalorder %s31, 1
          // Predicated region
          $region73: #{tpu_custom_call.1} parent=71 // pred_check
            %p521 = pneg %p520
          $region74: #{tpu_custom_call.1} parent=71 // pred_check_branch
            %523 = sbr.rel (%p521) target = $region76
          $region75: #{tpu_custom_call.1} parent=71 // pred_region
            %v524 = vld [vmem:[#allocation5] sm:$0xff]
            %v525 = vadd.f32 %v524, %v519
            %526 = vst [vmem:[#allocation5] sm:$0xff] %v525
            %v527 = vld [vmem:[#allocation6] sm:$0xff]
            %v528 = vmul.f32 %v519, %v519
            %v529 = vadd.f32 %v527, %v528
            %530 = vst [vmem:[#allocation6] sm:$0xff] %v529
          $region76: #{tpu_custom_call.1} parent=71 // pred_fallthru
            _
          %p531 = scmp.ge.s32.totalorder %s31, 2
          // Predicated region
          $region77: #{tpu_custom_call.1} parent=71 // pred_check
            %p532 = pneg %p531
          $region78: #{tpu_custom_call.1} parent=71 // pred_check_branch
            %534 = sbr.rel (%p532) target = $region80
          $region79: #{tpu_custom_call.1} parent=71 // pred_region
            %v535 = vld [vmem:[%s5] sm:$0xff]
            %v536 = vld [vmem:[%s6] sm:$0xff]
            %v537 = vld [vmem:[#allocation5] sm:$0xff]
            %538 = vadd.xlane.f32.xlu0 %v537
            %v539 = vpop.xlane.xlu0 %538
            %v540 = vld [vmem:[#allocation6] sm:$0xff]
            %541 = vadd.xlane.f32.xlu0 %v540
            %v542 = vpop.xlane.xlu0 %541
            %v543 = vmul.f32 %v539, 0.001953125
            %v544 = vmul.f32 %v542, 0.001953125
            %v545 = vmul.f32 %v543, %v543
            %v546 = vsub.f32 %v544, %v545
            %v547 = vadd.f32 %v546, 1e-05
            %v548 = vrsqrt.pop %v547
            %v549 = vmul.f32 %v548, %v547
            %v550 = vmul.f32 %v549, %v548
            %v551 = vmul.f32 0.5, %v550
            %v552 = vsub.f32 1.5, %v551
            %v553 = vmul.f32 %v548, %v552
            %vm554 = vweird.f32 %v547
            %vm555 = vweird.f32 %v548
            %vm556 = vmor %vm554, %vm555
            %v557 = vsel %vm556, %v548, %v553
            %v558 = vmul.f32 %v535, %v557
            %v559 = vmul.f32 %v558, %v543
            %v560 = vsub.f32 %v536, %v559
            %562 = vset.pattern.permute.xlu0 0
            %563 = vperm.xlu0 %562, %v558
            %v564 = vpop.permute.xlu0 %563
            %v566 = vmul.f32 %v564, %v519
            %568 = vset.pattern.permute.xlu0 0
            %569 = vperm.xlu0 %568, %v560
            %v570 = vpop.permute.xlu0 %569
            %v572 = vadd.f32 %v566, %v570
            %v573 = vmax.f32 %v572, 0.0
            %v574 = vld [vmem:[%s2] sm:$0xff]
            %vm575 = vcmask 64512
            %v577 = vsel %vm575, %v574, 0
            %579 = vmatpush.msra.mxu0 0.0
            %580 = vmatpush.msra.mxu0 0.0
            %581 = vmatpush.msra.mxu0 0.0
            %582 = vmatpush.msra.mxu0 0.0
            %583 = vmatpush.msra.mxu0 0.0
            %584 = vmatpush.msra.mxu0 0.0
            %585 = vmatpush.msra.mxu0 0.0
            %586 = vmatpush.msra.mxu0 0.0
            %587 = vmatpush.msra.mxu0 0.0
            %588 = vmatpush.msra.mxu0 0.0
            %589 = vmatpush.msra.mxu0 0.0
            %590 = vmatpush.msra.mxu0 0.0
            %591 = vmatpush.msra.mxu0 0.0
            %592 = vmatpush.msra.mxu0 0.0
            %593 = vmatpush.msra.mxu0 0.0
            %594 = vmatpush.msra.mxu0 %v573
            %595 = vmatmul.f32.gmra.mxu0 %v577
            %v596 = vpop.f32.mrf.mxu0
            %v597 = vadd.f32 0.0, %v596
            %598 = vdwg.mxu0
            %p599 = scmp.eq.s32.totalorder %s31, 2
            // Predicated region
            $region81: #{tpu_custom_call.1} parent=79 // pred_check
              %p600 = pneg %p599
            $region82: #{tpu_custom_call.1} parent=79 // pred_check_branch
              %602 = sbr.rel (%p600) target = $region84
            $region83: #{tpu_custom_call.1} parent=79 // pred_region
              %v603 = vld [vmem:[#allocation7] sm:$0xff]
              %v604 = vadd.f32 %v603, %v597
              %605 = vst [vmem:[#allocation7] sm:$0xff] %v604
              %v606 = vld [vmem:[#allocation8] sm:$0xff]
              %v607 = vmul.f32 %v597, %v597
              %v608 = vadd.f32 %v606, %v607
              %609 = vst [vmem:[#allocation8] sm:$0xff] %v608
            $region84: #{tpu_custom_call.1} parent=79 // pred_fallthru
              _
            %p610 = scmp.eq.s32.totalorder %s31, 3
            // Predicated region
            $region85: #{tpu_custom_call.1} parent=79 // pred_check
              %p611 = pneg %p610
            $region86: #{tpu_custom_call.1} parent=79 // pred_check_branch
              %613 = sbr.rel (%p611) target = $region88
            $region87: #{tpu_custom_call.1} parent=79 // pred_region
              %v614 = vld [vmem:[%s7] sm:$0xff]
              %v615 = vld [vmem:[%s8] sm:$0xff]
              %v616 = vld [vmem:[#allocation7] sm:$0xff]
              %617 = vadd.xlane.f32.xlu0 %v616
              %v618 = vpop.xlane.xlu0 %617
              %v619 = vld [vmem:[#allocation8] sm:$0xff]
              %620 = vadd.xlane.f32.xlu0 %v619
              %v621 = vpop.xlane.xlu0 %620
              %v622 = vmul.f32 %v618, 0.001953125
              %v623 = vmul.f32 %v621, 0.001953125
              %v624 = vmul.f32 %v622, %v622
              %v625 = vsub.f32 %v623, %v624
              %v626 = vadd.f32 %v625, 1e-05
              %v627 = vrsqrt.pop %v626
              %v628 = vmul.f32 %v627, %v626
              %v629 = vmul.f32 %v628, %v627
              %v630 = vmul.f32 0.5, %v629
              %v631 = vsub.f32 1.5, %v630
              %v632 = vmul.f32 %v627, %v631
              %vm633 = vweird.f32 %v626
              %vm634 = vweird.f32 %v627
              %vm635 = vmor %vm633, %vm634
              %v636 = vsel %vm635, %v627, %v632
              %v637 = vmul.f32 %v614, %v636
              %v638 = vmul.f32 %v637, %v622
              %v639 = vsub.f32 %v615, %v638
              %v640 = vld [vmem:[%s479 + $0x10] sm:$0xff]
              %642 = vset.pattern.permute.xlu0 0
              %643 = vperm.xlu0 %642, %v637
              %v644 = vpop.permute.xlu0 %643
              %v646 = vmul.f32 %v644, %v597
              %648 = vset.pattern.permute.xlu0 0
              %649 = vperm.xlu0 %648, %v639
              %v650 = vpop.permute.xlu0 %649
              %v652 = vadd.f32 %v646, %v650
              %v653 = vadd.f32 %v652, %v640
              %v654 = vmax.f32 %v653, 0.0
              %655 = vst [vmem:[%s392] sm:$0xff] %v654
            $region88: #{tpu_custom_call.1} parent=79 // pred_fallthru
              _
          $region80: #{tpu_custom_call.1} parent=71 // pred_fallthru
            _
        $region72: #{tpu_custom_call.1} parent=55 // pred_fallthru
          _
        %s656 = sand.u32 %s263, 1
        %s657 = scalar_lea.sflag [#allocation11], %s656
        %s658 = sand.u32 %s263, 1
        %s659 = smul.addr %s658, 8
        %s660 = scalar_lea.vmem [#allocation12], %s659
        // Predicated region
        $region89: #{tpu_custom_call.1} parent=55 // pred_check
          %p661 = pneg %p273
        $region90: #{tpu_custom_call.1} parent=55 // pred_check_branch
          %663 = sbr.rel (%p661) target = $region92
        $region91: #{tpu_custom_call.1} parent=55 // pred_region
          %p664 = scmp.eq.s32.totalorder %s31, 3
          %s665 = scalar_select %p664, %s32, 0
          %s666 = scalar_select %p664, %s33, 0
          %668 = vsyncadd %s657, 0
          %s669 = smul.addr %s665, 2
          %s670 = sadd.s32 %s666, %s669
          %s671 = smul.addr %s670, 8
          %s672 = scalar_lea.hbm %s9, %s671
          %s674 = sshll.u32 %s660, 4
          %s675 = int_to_ptr.vmem [resolvable:$true] %s674
          %s676 = sshll.u32 %s672, 4
          %s677 = int_to_ptr.hbm [resolvable:$true] %s676
          %679 = dma.vmem_to_hbm [thread:$0]  %s675, 128, %s677, %s657
        $region92: #{tpu_custom_call.1} parent=55 // pred_fallthru
          _
      $region56: #{tpu_custom_call.1} parent=5 // pred_fallthru
        _
      %p680 = scmp.le.s32.totalorder 2, %s21
      // Predicated region
      $region93: #{tpu_custom_call.1} parent=5 // pred_check
        %p681 = pneg %p680
      $region94: #{tpu_custom_call.1} parent=5 // pred_check_branch
        %683 = sbr.rel (%p681) target = $region96
      $region95: #{tpu_custom_call.1} parent=5 // pred_region
        %s684 = ssub.s32 %s21, 2
        // Predicated region
        $region97: #{tpu_custom_call.1} parent=95 // pred_check
          %p685 = pneg %p279
        $region98: #{tpu_custom_call.1} parent=95 // pred_check_branch
          %687 = sbr.rel (%p685) target = $region100
        $region99: #{tpu_custom_call.1} parent=95 // pred_region
          %s688 = sand.u32 %s264, 1
          %s689 = scalar_lea.sflag [#allocation11], %s688
          %s690 = sand.u32 %s264, 1
          %s691 = smul.addr %s690, 8
          %s692 = scalar_lea.vmem [#allocation12], %s691
          %694 = dma.done %s689, 128
        $region100: #{tpu_custom_call.1} parent=95 // pred_fallthru
          _
      $region96: #{tpu_custom_call.1} parent=5 // pred_fallthru
        _
    $region6: #{tpu_custom_call.1} parent=1 // loop_footer
      %s25 = sadd.s32 1, %s21
    $region7: #{tpu_custom_call.1} parent=1 // loop_footer_branch
      %20 = sbr.rel target = $region3
    $region8: #{tpu_custom_call.1} parent=1 // loop_exit
      _
    %695 = vsyncpa [#allocation10], 1
    %s696 = scalar_lea.sflag [#allocation10], 1
    %697 = vsyncpa %s696, 1
    %698 = vsyncpa [#allocation11], 1
    %s699 = scalar_lea.sflag [#allocation11], 1
    %700 = vsyncpa %s699, 1

</llo_original>
